<compile_context>
chip_gen: v7x
topology: tpu7x:2x2x1
jax: 0.10.0
libtpu: 0.0.40
codegen_flags: <defaults>
</compile_context>

<pallas_src>
import jax
import jax.numpy as jnp
from jax.experimental import pallas as pl
from jax.experimental.pallas import tpu as pltpu


def potential_kernel(x_ref, w1c_ref, w1s_ref, b1_ref, w2_ref, b2_ref,
                     w3_ref, b3_ref, w4_ref, b4_ref, out_ref):
    x = x_ref[...]                                              # (d, TB)
    cx = jnp.cos(x)
    sx = jnp.sin(x)

    # y1 = tanh(W1 @ cat(cos, sin) + b1)  computed as split matmuls
    h1 = (jnp.dot(w1c_ref[...], cx, preferred_element_type=jnp.float32)
          + jnp.dot(w1s_ref[...], sx, preferred_element_type=jnp.float32)
          + b1_ref[...])                                        # (N_w, TB)
    y1 = jnp.tanh(h1)

    # y2 = tanh(W2 @ y1 + b2) + y1
    y2 = jnp.tanh(
        jnp.dot(w2_ref[...], y1, preferred_element_type=jnp.float32)
        + b2_ref[...]) + y1                                     # (N_w, TB)

    # y3 = tanh(W3 @ y2 + b3) + y2
    y3 = jnp.tanh(
        jnp.dot(w3_ref[...], y2, preferred_element_type=jnp.float32)
        + b3_ref[...]) + y2                                     # (N_w, TB)

    # output = W4 @ y3 + b4                                     -> (1, TB)
    out_ref[...] = (
        jnp.dot(w4_ref[...], y3, preferred_element_type=jnp.float32)
        + b4_ref[0, 0])


def potential_forward(x, params, *, tb=512):
    """x: (d, B) float32; params: (W1, b1, W2, b2, W3, b3, W4, b4)."""
    W1, b1, W2, b2, W3, b3, W4, b4 = params
    d, B = x.shape
    assert W1.shape[1] == 2 * d

    # Split W1 so the kernel avoids the sublane-axis concatenate of cos/sin.
    W1c = W1[:, :d]
    W1s = W1[:, d:]

    # Lane-dense tiling over the column (batch) axis: tile multiple of 128.
    b_pad = max(128, ((B + 127) // 128) * 128)
    tb = min(tb, b_pad)
    b_pad = ((b_pad + tb - 1) // tb) * tb
    x_pad = x if b_pad == B else jnp.pad(x, ((0, 0), (0, b_pad - B)))

    grid = (b_pad // tb,)

    def resident(arr):
        # Full-extent block, constant block index -> stays in VMEM, no re-DMA.
        shape = arr.shape
        return pl.BlockSpec(shape, lambda i, _n=len(shape): (0,) * _n)

    out = pl.pallas_call(
        potential_kernel,
        out_shape=jax.ShapeDtypeStruct((1, b_pad), jnp.float32),
        grid=grid,
        in_specs=[
            pl.BlockSpec((d, tb), lambda i: (0, i)),            # x tile
            resident(W1c), resident(W1s), resident(b1),
            resident(W2), resident(b2),
            resident(W3), resident(b3),
            resident(W4),
            pl.BlockSpec(memory_space=pltpu.MemorySpace.SMEM),  # scalar b4
        ],
        out_specs=pl.BlockSpec((1, tb), lambda i: (0, i)),
        compiler_params=pltpu.CompilerParams(
            dimension_semantics=("parallel",)),
    )(x_pad, W1c, W1s, b1, W2, b2, W3, b3, W4, b4)

    return out[:, :B]


def init_params(key, n_in, n_w):
    """Deterministic init mirroring the torch module's __init__ shapes."""
    ks = jax.random.split(key, 9)
    W1 = jax.random.normal(ks[0], (n_w, n_in), jnp.float32) / 5.0
    b1 = jax.random.normal(ks[1], (n_w, 1), jnp.float32) / 5.0
    W2 = jax.random.normal(ks[2], (n_w, n_w), jnp.float32) / 5.0
    b2 = jax.random.normal(ks[3], (n_w, 1), jnp.float32) / 5.0
    W3 = jax.random.normal(ks[4], (n_w, n_w), jnp.float32) / 5.0
    b3 = jax.random.normal(ks[5], (n_w, 1), jnp.float32) / 5.0
    W4 = jax.random.normal(ks[6], (1, n_w), jnp.float32) / 5.0
    b4 = jax.random.normal(ks[7], (1, 1), jnp.float32)
    # b5 exists in the torch module but is unused in forward(); omitted here.
    return (W1, b1, W2, b2, W3, b3, W4, b4)


def potential_reference(x, params):
    """Pure-JAX reference mirroring the PyTorch forward."""
    W1, b1, W2, b2, W3, b3, W4, b4 = params
    y0 = jnp.concatenate([jnp.cos(x), jnp.sin(x)], axis=0)
    y1 = jnp.tanh(W1 @ y0 + b1)
    y2 = jnp.tanh(W2 @ y1 + b2) + y1
    y3 = jnp.tanh(W3 @ y2 + b3) + y2
    return W4 @ y3 + b4


if __name__ == "__main__":
    d, B = 4, 200        # input (d, B); B not a multiple of 128 -> exercises padding
    n_in, n_w = 2 * d, 32

    key = jax.random.PRNGKey(0)
    k_x, k_p = jax.random.split(key)
    x = jax.random.normal(k_x, (d, B), jnp.float32)
    params = init_params(k_p, n_in, n_w)

    # tb=128 -> 2 grid steps at this small demo size (exercises the pipeline);
    # default tb=512 is the large-B production setting.
    out = potential_forward(x, params, tb=128)
    out = jax.block_until_ready(out)

    ref = potential_reference(x, params)
    assert out.shape == (1, B)
    assert jnp.allclose(out, ref, atol=1e-4, rtol=1e-4), \
        float(jnp.max(jnp.abs(out - ref)))

    print("KERNEL_OK")
</pallas_src>

<mosaic_0001>
module attributes {stable_mosaic.version = 11 : i64} {
  func.func @potential_kernel(%arg0: i32, %arg1: memref<4x128xf32, #tpu.memory_space<vmem>>, %arg2: memref<32x4xf32, #tpu.memory_space<vmem>>, %arg3: memref<32x4xf32, #tpu.memory_space<vmem>>, %arg4: memref<32x1xf32, #tpu.memory_space<vmem>>, %arg5: memref<32x32xf32, #tpu.memory_space<vmem>>, %arg6: memref<32x1xf32, #tpu.memory_space<vmem>>, %arg7: memref<32x32xf32, #tpu.memory_space<vmem>>, %arg8: memref<32x1xf32, #tpu.memory_space<vmem>>, %arg9: memref<1x32xf32, #tpu.memory_space<vmem>>, %arg10: memref<1x1xf32, #tpu.memory_space<smem>>, %arg11: memref<1x128xf32, #tpu.memory_space<vmem>>) attributes {dimension_semantics = [#tpu.dimension_semantics<parallel>], iteration_bounds = array<i64: 2>, scalar_prefetch = 0 : i64, scratch_operands = 0 : i64, tpu.core_type = #tpu.core_type<tc>, window_params = [{transform_indices = @transform_0, window_bounds = array<i64: 4, 128>}, {pipeline_mode = #tpu.pipeline_mode<synchronous>, transform_indices = @transform_1, window_bounds = array<i64: 32, 4>}, {pipeline_mode = #tpu.pipeline_mode<synchronous>, transform_indices = @transform_2, window_bounds = array<i64: 32, 4>}, {pipeline_mode = #tpu.pipeline_mode<synchronous>, transform_indices = @transform_3, window_bounds = array<i64: 32, 1>}, {pipeline_mode = #tpu.pipeline_mode<synchronous>, transform_indices = @transform_4, window_bounds = array<i64: 32, 32>}, {pipeline_mode = #tpu.pipeline_mode<synchronous>, transform_indices = @transform_5, window_bounds = array<i64: 32, 1>}, {pipeline_mode = #tpu.pipeline_mode<synchronous>, transform_indices = @transform_6, window_bounds = array<i64: 32, 32>}, {pipeline_mode = #tpu.pipeline_mode<synchronous>, transform_indices = @transform_7, window_bounds = array<i64: 32, 1>}, {pipeline_mode = #tpu.pipeline_mode<synchronous>, transform_indices = @transform_8, window_bounds = array<i64: 1, 32>}, {transform_indices = @transform_9, window_bounds = array<i64: 1, 1>}, {transform_indices = @transform_10, window_bounds = array<i64: 1, 128>}]} {
    %c0 = arith.constant 0 : index
    %c0_0 = arith.constant 0 : index
    %0 = vector.load %arg1[%c0, %c0_0] : memref<4x128xf32, #tpu.memory_space<vmem>>, vector<4x128xf32>
    %1 = math.cos %0 : vector<4x128xf32>
    %2 = math.sin %0 : vector<4x128xf32>
    %c0_1 = arith.constant 0 : index
    %c0_2 = arith.constant 0 : index
    %3 = vector.load %arg2[%c0_1, %c0_2] : memref<32x4xf32, #tpu.memory_space<vmem>>, vector<32x4xf32>
    %cst = arith.constant dense<0.000000e+00> : vector<32x128xf32>
    %4 = tpu.matmul %3, %1, %cst {dimension_numbers = #tpu.dot_dimension_numbers<[1], [0], [0], [1], [0, 0, 1, 1], [], []>} : vector<32x4xf32>, vector<4x128xf32>, vector<32x128xf32> -> vector<32x128xf32>
    %c0_3 = arith.constant 0 : index
    %c0_4 = arith.constant 0 : index
    %5 = vector.load %arg3[%c0_3, %c0_4] : memref<32x4xf32, #tpu.memory_space<vmem>>, vector<32x4xf32>
    %cst_5 = arith.constant dense<0.000000e+00> : vector<32x128xf32>
    %6 = tpu.matmul %5, %2, %cst_5 {dimension_numbers = #tpu.dot_dimension_numbers<[1], [0], [0], [1], [0, 0, 1, 1], [], []>} : vector<32x4xf32>, vector<4x128xf32>, vector<32x128xf32> -> vector<32x128xf32>
    %7 = arith.addf %4, %6 : vector<32x128xf32>
    %c0_6 = arith.constant 0 : index
    %c0_7 = arith.constant 0 : index
    %8 = vector.load %arg4[%c0_6, %c0_7] : memref<32x1xf32, #tpu.memory_space<vmem>>, vector<32x1xf32>
    %9 = vector.broadcast %8 : vector<32x1xf32> to vector<32x128xf32>
    %10 = arith.addf %7, %9 : vector<32x128xf32>
    %11 = math.tanh %10 : vector<32x128xf32>
    %c0_8 = arith.constant 0 : index
    %c0_9 = arith.constant 0 : index
    %12 = vector.load %arg5[%c0_8, %c0_9] : memref<32x32xf32, #tpu.memory_space<vmem>>, vector<32x32xf32>
    %cst_10 = arith.constant dense<0.000000e+00> : vector<32x128xf32>
    %13 = tpu.matmul %12, %11, %cst_10 {dimension_numbers = #tpu.dot_dimension_numbers<[1], [0], [0], [1], [0, 0, 1, 1], [], []>} : vector<32x32xf32>, vector<32x128xf32>, vector<32x128xf32> -> vector<32x128xf32>
    %c0_11 = arith.constant 0 : index
    %c0_12 = arith.constant 0 : index
    %14 = vector.load %arg6[%c0_11, %c0_12] : memref<32x1xf32, #tpu.memory_space<vmem>>, vector<32x1xf32>
    %15 = vector.broadcast %14 : vector<32x1xf32> to vector<32x128xf32>
    %16 = arith.addf %13, %15 : vector<32x128xf32>
    %17 = math.tanh %16 : vector<32x128xf32>
    %18 = arith.addf %17, %11 : vector<32x128xf32>
    %c0_13 = arith.constant 0 : index
    %c0_14 = arith.constant 0 : index
    %19 = vector.load %arg7[%c0_13, %c0_14] : memref<32x32xf32, #tpu.memory_space<vmem>>, vector<32x32xf32>
    %cst_15 = arith.constant dense<0.000000e+00> : vector<32x128xf32>
    %20 = tpu.matmul %19, %18, %cst_15 {dimension_numbers = #tpu.dot_dimension_numbers<[1], [0], [0], [1], [0, 0, 1, 1], [], []>} : vector<32x32xf32>, vector<32x128xf32>, vector<32x128xf32> -> vector<32x128xf32>
    %c0_16 = arith.constant 0 : index
    %c0_17 = arith.constant 0 : index
    %21 = vector.load %arg8[%c0_16, %c0_17] : memref<32x1xf32, #tpu.memory_space<vmem>>, vector<32x1xf32>
    %22 = vector.broadcast %21 : vector<32x1xf32> to vector<32x128xf32>
    %23 = arith.addf %20, %22 : vector<32x128xf32>
    %24 = math.tanh %23 : vector<32x128xf32>
    %25 = arith.addf %24, %18 : vector<32x128xf32>
    %c0_18 = arith.constant 0 : index
    %c0_19 = arith.constant 0 : index
    %26 = vector.load %arg9[%c0_18, %c0_19] : memref<1x32xf32, #tpu.memory_space<vmem>>, vector<1x32xf32>
    %cst_20 = arith.constant dense<0.000000e+00> : vector<1x128xf32>
    %27 = tpu.matmul %26, %25, %cst_20 {dimension_numbers = #tpu.dot_dimension_numbers<[1], [0], [0], [1], [0, 0, 1, 1], [], []>} : vector<1x32xf32>, vector<32x128xf32>, vector<1x128xf32> -> vector<1x128xf32>
    %c0_21 = arith.constant 0 : index
    %c0_22 = arith.constant 0 : index
    %28 = memref.load %arg10[%c0_21, %c0_22] : memref<1x1xf32, #tpu.memory_space<smem>>
    %29 = vector.broadcast %28 : f32 to vector<1x128xf32>
    %30 = arith.addf %27, %29 : vector<1x128xf32>
    %c0_23 = arith.constant 0 : index
    %c0_24 = arith.constant 0 : index
    %31 = vector.load %arg11[%c0_23, %c0_24] : memref<1x128xf32, #tpu.memory_space<vmem>>, vector<1x128xf32>
    tpu.vector_store %arg11[%c0_23, %c0_24], %30 {strides = array<i32>} : memref<1x128xf32, #tpu.memory_space<vmem>>, vector<1x128xf32>,
    return
  }
  func.func @transform_0(%arg0: i32) -> (i32, i32) {
    %c0_i32 = arith.constant 0 : i32
    %c0_i32_0 = arith.constant 0 : i32
    return %c0_i32, %arg0 : i32, i32
  }
  func.func @transform_1(%arg0: i32) -> (i32, i32) {
    %c0_i32 = arith.constant 0 : i32
    %c0_i32_0 = arith.constant 0 : i32
    %c0_i32_1 = arith.constant 0 : i32
    return %c0_i32, %c0_i32_0 : i32, i32
  }
  func.func @transform_2(%arg0: i32) -> (i32, i32) {
    %c0_i32 = arith.constant 0 : i32
    %c0_i32_0 = arith.constant 0 : i32
    %c0_i32_1 = arith.constant 0 : i32
    return %c0_i32, %c0_i32_0 : i32, i32
  }
  func.func @transform_3(%arg0: i32) -> (i32, i32) {
    %c0_i32 = arith.constant 0 : i32
    %c0_i32_0 = arith.constant 0 : i32
    %c0_i32_1 = arith.constant 0 : i32
    return %c0_i32, %c0_i32_0 : i32, i32
  }
  func.func @transform_4(%arg0: i32) -> (i32, i32) {
    %c0_i32 = arith.constant 0 : i32
    %c0_i32_0 = arith.constant 0 : i32
    %c0_i32_1 = arith.constant 0 : i32
    return %c0_i32, %c0_i32_0 : i32, i32
  }
  func.func @transform_5(%arg0: i32) -> (i32, i32) {
    %c0_i32 = arith.constant 0 : i32
    %c0_i32_0 = arith.constant 0 : i32
    %c0_i32_1 = arith.constant 0 : i32
    return %c0_i32, %c0_i32_0 : i32, i32
  }
  func.func @transform_6(%arg0: i32) -> (i32, i32) {
    %c0_i32 = arith.constant 0 : i32
    %c0_i32_0 = arith.constant 0 : i32
    %c0_i32_1 = arith.constant 0 : i32
    return %c0_i32, %c0_i32_0 : i32, i32
  }
  func.func @transform_7(%arg0: i32) -> (i32, i32) {
    %c0_i32 = arith.constant 0 : i32
    %c0_i32_0 = arith.constant 0 : i32
    %c0_i32_1 = arith.constant 0 : i32
    return %c0_i32, %c0_i32_0 : i32, i32
  }
  func.func @transform_8(%arg0: i32) -> (i32, i32) {
    %c0_i32 = arith.constant 0 : i32
    %c0_i32_0 = arith.constant 0 : i32
    %c0_i32_1 = arith.constant 0 : i32
    return %c0_i32, %c0_i32_0 : i32, i32
  }
  func.func @transform_9(%arg0: i32) -> (i32, i32) {
    %c0_i32 = arith.constant 0 : i32
    %c0_i32_0 = arith.constant 0 : i32
    %c0_i32_1 = arith.constant 0 : i32
    return %c0_i32, %c0_i32_0 : i32, i32
  }
  func.func @transform_10(%arg0: i32) -> (i32, i32) {
    %c0_i32 = arith.constant 0 : i32
    %c0_i32_0 = arith.constant 0 : i32
    return %c0_i32, %arg0 : i32, i32
  }
}

</mosaic_0001>

<llo_original>
// kernel: tpu_custom_call.1
$region0: #{tpu_custom_call.1}
  #allocation0 [shape = 'u32[]', space=smem, size = 0x4, offset = 0x4, fixed_abs, tag = 'smem constant byte address 0x4 - core index']
  #allocation1 [shape = 'u32[144,128]{1,0:T(1,128)}', space=vmem, size = 0x12000, scoped, tag = 'internal scratch']
  #allocation2 [shape = 'f32[1,1]{1,0:T(1,128)S(6)}', space=smem, size = 0x200, scoped, tag = 'scoped memory for tpu_custom_call.1']
  %s0 = inlined_call_operand.vmem [shape: f32[4,256], index: 0, kind: input, shape index: {}]
  %s1 = inlined_call_operand.vmem [shape: f32[32,4], index: 1, kind: input, shape index: {}]
  %s2 = inlined_call_operand.vmem [shape: f32[32,4], index: 2, kind: input, shape index: {}]
  %s3 = inlined_call_operand.vmem [shape: f32[32,1], index: 3, kind: input, shape index: {}]
  %s4 = inlined_call_operand.vmem [shape: f32[32,32], index: 4, kind: input, shape index: {}]
  %s5 = inlined_call_operand.vmem [shape: f32[32,1], index: 5, kind: input, shape index: {}]
  %s6 = inlined_call_operand.vmem [shape: f32[32,32], index: 6, kind: input, shape index: {}]
  %s7 = inlined_call_operand.vmem [shape: f32[32,1], index: 7, kind: input, shape index: {}]
  %s8 = inlined_call_operand.vmem [shape: f32[1,32], index: 8, kind: input, shape index: {}]
  %s9 = inlined_call_operand.<no memory space> [shape: f32[1,1], index: 9, kind: input, shape index: {}]
  %s10 = inlined_call_operand.hbm [shape: f32[1,256], index: 10, kind: output, shape index: {}]
  %s11 = sld [smem:[#allocation0]]
  $region73: #{tpu_custom_call.1} parent=0
    _
  %s13 = ssub.s32 1, %s11
  %s14 = scalar_select 0, %s13, %s11
  %15 = sst [smem:[#allocation2]] %s9
  $region1: #{tpu_custom_call.1} parent=0
    #allocation3 [shape = 'u8[1024]{0}', space=vmem, size = 0x400, scoped, tag = 'output window, operand 0']
    #allocation4 [shape = 's32[2]{0}', space=sflag, size = 0x8, scoped, tag = 'scoped memory for tpu_custom_call.1']
    %16 = vsyncpa [#allocation4], 0
    %s17 = scalar_lea.sflag [#allocation4], 1
    %18 = vsyncpa %s17, 0
    loop: start=0, step=1, limit=4
    $region2: #{tpu_custom_call.1} parent=1 // loop_pre_header
      _
    $region3: #{tpu_custom_call.1} parent=1 // loop_header
      %s20 = sphi 0, %s24
      %p21 = scmp.ge.s32.totalorder %s20, 4
      %s30 = sphi 0, %s32
      %s33 = sphi 0, %s30
      %s34 = sphi 0, %s33
      %s50 = sphi 0, %s34
      %s54 = sphi 0, %s54
      %s56 = sphi 0, %s54
      %s57 = sphi 0, %s56
      %s71 = sphi 0, %s57
      %s75 = sphi 0, %s75
      %s77 = sphi 0, %s75
      %s78 = sphi 0, %s77
      %s92 = sphi 0, %s78
      %s96 = sphi 0, %s96
      %s98 = sphi 0, %s96
      %s99 = sphi 0, %s98
      %s113 = sphi 0, %s99
      %s117 = sphi 0, %s117
      %s119 = sphi 0, %s117
      %s120 = sphi 0, %s119
      %s134 = sphi 0, %s120
      %s138 = sphi 0, %s138
      %s140 = sphi 0, %s138
      %s141 = sphi 0, %s140
      %s155 = sphi 0, %s141
      %s159 = sphi 0, %s159
      %s161 = sphi 0, %s159
      %s162 = sphi 0, %s161
      %s176 = sphi 0, %s162
      %s180 = sphi 0, %s180
      %s182 = sphi 0, %s180
      %s183 = sphi 0, %s182
      %s197 = sphi 0, %s183
      %s201 = sphi 0, %s201
      %s203 = sphi 0, %s201
      %s204 = sphi 0, %s203
      %s218 = sphi 0, %s204
      %s222 = sphi 0, %s222
      %s224 = sphi 0, %s222
      %s225 = sphi 0, %s224
      %s239 = sphi 0, %s225
      %s245 = sphi 0, %s247
      %s248 = sphi 0, %s245
      %s249 = sphi 0, %s248
      %s265 = sphi 0, %s249
    $region4: #{tpu_custom_call.1} parent=1 // loop_header_branch
      %23 = sbr.rel (%p21) target = $region8
    $region5: #{tpu_custom_call.1} parent=1 // loop_body
      %s25 = ssub.s32 %s20, 1
      %s26 = ssub.s32 %s20, 2
      %s27 = sadd.s32 %s20, 1
      %s28 = ssub.s32 %s20, %s27
      %p29 = scmp.eq.s32.totalorder %s28, 0
      %s31 = sadd.s32 %s30, 1
      %s32 = scalar_select %p29, %s30, %s31
      %p35 = pneg %p29
      %p36 = scmp.eq.s32.totalorder %s20, 1
      %p37 = por %p35, %p36
      %p38 = scmp.ne.s32.totalorder %s30, %s33
      %p39 = scmp.eq.s32.totalorder %s20, 0
      %p40 = por %p38, %p39
      %p41 = scmp.ne.s32.totalorder %s30, %s33
      %p42 = scmp.eq.s32.totalorder %s25, 1
      %p43 = por %p41, %p42
      %p44 = scmp.ne.s32.totalorder %s33, %s34
      %p45 = scmp.eq.s32.totalorder %s25, 0
      %p46 = por %p44, %p45
      %p47 = scmp.ne.s32.totalorder %s33, %s34
      %p48 = scmp.eq.s32.totalorder %s26, 1
      %p49 = por %p47, %p48
      %p51 = scmp.ne.s32.totalorder %s34, %s50
      %p52 = scmp.eq.s32.totalorder %s26, 0
      %p53 = por %p51, %p52
      %s55 = sadd.s32 %s54, 1
      %p58 = scmp.eq.s32.totalorder %s20, 1
      %p59 = scmp.ne.s32.totalorder %s54, %s56
      %p60 = scmp.eq.s32.totalorder %s20, 0
      %p61 = por %p59, %p60
      %p62 = scmp.ne.s32.totalorder %s54, %s56
      %p63 = scmp.eq.s32.totalorder %s25, 1
      %p64 = por %p62, %p63
      %p65 = scmp.ne.s32.totalorder %s56, %s57
      %p66 = scmp.eq.s32.totalorder %s25, 0
      %p67 = por %p65, %p66
      %p68 = scmp.ne.s32.totalorder %s56, %s57
      %p69 = scmp.eq.s32.totalorder %s26, 1
      %p70 = por %p68, %p69
      %p72 = scmp.ne.s32.totalorder %s57, %s71
      %p73 = scmp.eq.s32.totalorder %s26, 0
      %p74 = por %p72, %p73
      %s76 = sadd.s32 %s75, 1
      %p79 = scmp.eq.s32.totalorder %s20, 1
      %p80 = scmp.ne.s32.totalorder %s75, %s77
      %p81 = scmp.eq.s32.totalorder %s20, 0
      %p82 = por %p80, %p81
      %p83 = scmp.ne.s32.totalorder %s75, %s77
      %p84 = scmp.eq.s32.totalorder %s25, 1
      %p85 = por %p83, %p84
      %p86 = scmp.ne.s32.totalorder %s77, %s78
      %p87 = scmp.eq.s32.totalorder %s25, 0
      %p88 = por %p86, %p87
      %p89 = scmp.ne.s32.totalorder %s77, %s78
      %p90 = scmp.eq.s32.totalorder %s26, 1
      %p91 = por %p89, %p90
      %p93 = scmp.ne.s32.totalorder %s78, %s92
      %p94 = scmp.eq.s32.totalorder %s26, 0
      %p95 = por %p93, %p94
      %s97 = sadd.s32 %s96, 1
      %p100 = scmp.eq.s32.totalorder %s20, 1
      %p101 = scmp.ne.s32.totalorder %s96, %s98
      %p102 = scmp.eq.s32.totalorder %s20, 0
      %p103 = por %p101, %p102
      %p104 = scmp.ne.s32.totalorder %s96, %s98
      %p105 = scmp.eq.s32.totalorder %s25, 1
      %p106 = por %p104, %p105
      %p107 = scmp.ne.s32.totalorder %s98, %s99
      %p108 = scmp.eq.s32.totalorder %s25, 0
      %p109 = por %p107, %p108
      %p110 = scmp.ne.s32.totalorder %s98, %s99
      %p111 = scmp.eq.s32.totalorder %s26, 1
      %p112 = por %p110, %p111
      %p114 = scmp.ne.s32.totalorder %s99, %s113
      %p115 = scmp.eq.s32.totalorder %s26, 0
      %p116 = por %p114, %p115
      %s118 = sadd.s32 %s117, 1
      %p121 = scmp.eq.s32.totalorder %s20, 1
      %p122 = scmp.ne.s32.totalorder %s117, %s119
      %p123 = scmp.eq.s32.totalorder %s20, 0
      %p124 = por %p122, %p123
      %p125 = scmp.ne.s32.totalorder %s117, %s119
      %p126 = scmp.eq.s32.totalorder %s25, 1
      %p127 = por %p125, %p126
      %p128 = scmp.ne.s32.totalorder %s119, %s120
      %p129 = scmp.eq.s32.totalorder %s25, 0
      %p130 = por %p128, %p129
      %p131 = scmp.ne.s32.totalorder %s119, %s120
      %p132 = scmp.eq.s32.totalorder %s26, 1
      %p133 = por %p131, %p132
      %p135 = scmp.ne.s32.totalorder %s120, %s134
      %p136 = scmp.eq.s32.totalorder %s26, 0
      %p137 = por %p135, %p136
      %s139 = sadd.s32 %s138, 1
      %p142 = scmp.eq.s32.totalorder %s20, 1
      %p143 = scmp.ne.s32.totalorder %s138, %s140
      %p144 = scmp.eq.s32.totalorder %s20, 0
      %p145 = por %p143, %p144
      %p146 = scmp.ne.s32.totalorder %s138, %s140
      %p147 = scmp.eq.s32.totalorder %s25, 1
      %p148 = por %p146, %p147
      %p149 = scmp.ne.s32.totalorder %s140, %s141
      %p150 = scmp.eq.s32.totalorder %s25, 0
      %p151 = por %p149, %p150
      %p152 = scmp.ne.s32.totalorder %s140, %s141
      %p153 = scmp.eq.s32.totalorder %s26, 1
      %p154 = por %p152, %p153
      %p156 = scmp.ne.s32.totalorder %s141, %s155
      %p157 = scmp.eq.s32.totalorder %s26, 0
      %p158 = por %p156, %p157
      %s160 = sadd.s32 %s159, 1
      %p163 = scmp.eq.s32.totalorder %s20, 1
      %p164 = scmp.ne.s32.totalorder %s159, %s161
      %p165 = scmp.eq.s32.totalorder %s20, 0
      %p166 = por %p164, %p165
      %p167 = scmp.ne.s32.totalorder %s159, %s161
      %p168 = scmp.eq.s32.totalorder %s25, 1
      %p169 = por %p167, %p168
      %p170 = scmp.ne.s32.totalorder %s161, %s162
      %p171 = scmp.eq.s32.totalorder %s25, 0
      %p172 = por %p170, %p171
      %p173 = scmp.ne.s32.totalorder %s161, %s162
      %p174 = scmp.eq.s32.totalorder %s26, 1
      %p175 = por %p173, %p174
      %p177 = scmp.ne.s32.totalorder %s162, %s176
      %p178 = scmp.eq.s32.totalorder %s26, 0
      %p179 = por %p177, %p178
      %s181 = sadd.s32 %s180, 1
      %p184 = scmp.eq.s32.totalorder %s20, 1
      %p185 = scmp.ne.s32.totalorder %s180, %s182
      %p186 = scmp.eq.s32.totalorder %s20, 0
      %p187 = por %p185, %p186
      %p188 = scmp.ne.s32.totalorder %s180, %s182
      %p189 = scmp.eq.s32.totalorder %s25, 1
      %p190 = por %p188, %p189
      %p191 = scmp.ne.s32.totalorder %s182, %s183
      %p192 = scmp.eq.s32.totalorder %s25, 0
      %p193 = por %p191, %p192
      %p194 = scmp.ne.s32.totalorder %s182, %s183
      %p195 = scmp.eq.s32.totalorder %s26, 1
      %p196 = por %p194, %p195
      %p198 = scmp.ne.s32.totalorder %s183, %s197
      %p199 = scmp.eq.s32.totalorder %s26, 0
      %p200 = por %p198, %p199
      %s202 = sadd.s32 %s201, 1
      %p205 = scmp.eq.s32.totalorder %s20, 1
      %p206 = scmp.ne.s32.totalorder %s201, %s203
      %p207 = scmp.eq.s32.totalorder %s20, 0
      %p208 = por %p206, %p207
      %p209 = scmp.ne.s32.totalorder %s201, %s203
      %p210 = scmp.eq.s32.totalorder %s25, 1
      %p211 = por %p209, %p210
      %p212 = scmp.ne.s32.totalorder %s203, %s204
      %p213 = scmp.eq.s32.totalorder %s25, 0
      %p214 = por %p212, %p213
      %p215 = scmp.ne.s32.totalorder %s203, %s204
      %p216 = scmp.eq.s32.totalorder %s26, 1
      %p217 = por %p215, %p216
      %p219 = scmp.ne.s32.totalorder %s204, %s218
      %p220 = scmp.eq.s32.totalorder %s26, 0
      %p221 = por %p219, %p220
      %s223 = sadd.s32 %s222, 1
      %p226 = scmp.eq.s32.totalorder %s20, 1
      %p227 = scmp.ne.s32.totalorder %s222, %s224
      %p228 = scmp.eq.s32.totalorder %s20, 0
      %p229 = por %p227, %p228
      %p230 = scmp.ne.s32.totalorder %s222, %s224
      %p231 = scmp.eq.s32.totalorder %s25, 1
      %p232 = por %p230, %p231
      %p233 = scmp.ne.s32.totalorder %s224, %s225
      %p234 = scmp.eq.s32.totalorder %s25, 0
      %p235 = por %p233, %p234
      %p236 = scmp.ne.s32.totalorder %s224, %s225
      %p237 = scmp.eq.s32.totalorder %s26, 1
      %p238 = por %p236, %p237
      %p240 = scmp.ne.s32.totalorder %s225, %s239
      %p241 = scmp.eq.s32.totalorder %s26, 0
      %p242 = por %p240, %p241
      %s243 = ssub.s32 %s20, %s27
      %p244 = scmp.eq.s32.totalorder %s243, 0
      %s246 = sadd.s32 %s245, 1
      %s247 = scalar_select %p244, %s245, %s246
      %p250 = pneg %p244
      %p251 = scmp.eq.s32.totalorder %s20, 1
      %p252 = por %p250, %p251
      %p253 = scmp.ne.s32.totalorder %s245, %s248
      %p254 = scmp.eq.s32.totalorder %s20, 0
      %p255 = por %p253, %p254
      %p256 = scmp.ne.s32.totalorder %s245, %s248
      %p257 = scmp.eq.s32.totalorder %s25, 1
      %p258 = por %p256, %p257
      %p259 = scmp.ne.s32.totalorder %s248, %s249
      %p260 = scmp.eq.s32.totalorder %s25, 0
      %p261 = por %p259, %p260
      %p262 = scmp.ne.s32.totalorder %s248, %s249
      %p263 = scmp.eq.s32.totalorder %s26, 1
      %p264 = por %p262, %p263
      %p266 = scmp.ne.s32.totalorder %s249, %s265
      %p267 = scmp.eq.s32.totalorder %s26, 0
      %p268 = por %p266, %p267
      %p269 = scmp.le.s32.totalorder 1, %s20
      %p270 = scmp.lt.s32.totalorder %s20, 3
      %p271 = pnand %p269, %p270
      %p272 = pneg %p271
      // Predicated region
      $region9: #{tpu_custom_call.1} parent=5 // pred_check
        _
      $region10: #{tpu_custom_call.1} parent=5 // pred_check_branch
        %274 = sbr.rel (%p271) target = $region12
      $region11: #{tpu_custom_call.1} parent=5 // pred_region
        %s275 = ssub.s32 %s20, 1
        // Predicated region
        $region13: #{tpu_custom_call.1} parent=11 // pred_check
          %p276 = pneg %p67
        $region14: #{tpu_custom_call.1} parent=11 // pred_check_branch
          %278 = sbr.rel (%p276) target = $region16
        $region15: #{tpu_custom_call.1} parent=11 // pred_region
          _
        $region16: #{tpu_custom_call.1} parent=11 // pred_fallthru
          _
        // Predicated region
        $region17: #{tpu_custom_call.1} parent=11 // pred_check
          %p279 = pneg %p88
        $region18: #{tpu_custom_call.1} parent=11 // pred_check_branch
          %281 = sbr.rel (%p279) target = $region20
        $region19: #{tpu_custom_call.1} parent=11 // pred_region
          _
        $region20: #{tpu_custom_call.1} parent=11 // pred_fallthru
          _
        // Predicated region
        $region21: #{tpu_custom_call.1} parent=11 // pred_check
          %p282 = pneg %p109
        $region22: #{tpu_custom_call.1} parent=11 // pred_check_branch
          %284 = sbr.rel (%p282) target = $region24
        $region23: #{tpu_custom_call.1} parent=11 // pred_region
          _
        $region24: #{tpu_custom_call.1} parent=11 // pred_fallthru
          _
        // Predicated region
        $region25: #{tpu_custom_call.1} parent=11 // pred_check
          %p285 = pneg %p130
        $region26: #{tpu_custom_call.1} parent=11 // pred_check_branch
          %287 = sbr.rel (%p285) target = $region28
        $region27: #{tpu_custom_call.1} parent=11 // pred_region
          _
        $region28: #{tpu_custom_call.1} parent=11 // pred_fallthru
          _
        // Predicated region
        $region29: #{tpu_custom_call.1} parent=11 // pred_check
          %p288 = pneg %p151
        $region30: #{tpu_custom_call.1} parent=11 // pred_check_branch
          %290 = sbr.rel (%p288) target = $region32
        $region31: #{tpu_custom_call.1} parent=11 // pred_region
          _
        $region32: #{tpu_custom_call.1} parent=11 // pred_fallthru
          _
        // Predicated region
        $region33: #{tpu_custom_call.1} parent=11 // pred_check
          %p291 = pneg %p172
        $region34: #{tpu_custom_call.1} parent=11 // pred_check_branch
          %293 = sbr.rel (%p291) target = $region36
        $region35: #{tpu_custom_call.1} parent=11 // pred_region
          _
        $region36: #{tpu_custom_call.1} parent=11 // pred_fallthru
          _
        // Predicated region
        $region37: #{tpu_custom_call.1} parent=11 // pred_check
          %p294 = pneg %p193
        $region38: #{tpu_custom_call.1} parent=11 // pred_check_branch
          %296 = sbr.rel (%p294) target = $region40
        $region39: #{tpu_custom_call.1} parent=11 // pred_region
          _
        $region40: #{tpu_custom_call.1} parent=11 // pred_fallthru
          _
        // Predicated region
        $region41: #{tpu_custom_call.1} parent=11 // pred_check
          %p297 = pneg %p214
        $region42: #{tpu_custom_call.1} parent=11 // pred_check_branch
          %299 = sbr.rel (%p297) target = $region44
        $region43: #{tpu_custom_call.1} parent=11 // pred_region
          _
        $region44: #{tpu_custom_call.1} parent=11 // pred_fallthru
          _
        // Predicated region
        $region45: #{tpu_custom_call.1} parent=11 // pred_check
          %p300 = pneg %p235
        $region46: #{tpu_custom_call.1} parent=11 // pred_check_branch
          %302 = sbr.rel (%p300) target = $region48
        $region47: #{tpu_custom_call.1} parent=11 // pred_region
          _
        $region48: #{tpu_custom_call.1} parent=11 // pred_fallthru
          _
      $region12: #{tpu_custom_call.1} parent=5 // pred_fallthru
        _
      %p303 = scmp.lt.s32.totalorder %s20, 2
      // Predicated region
      $region49: #{tpu_custom_call.1} parent=5 // pred_check
        %p304 = pneg %p303
      $region50: #{tpu_custom_call.1} parent=5 // pred_check_branch
        %306 = sbr.rel (%p304) target = $region52
      $region51: #{tpu_custom_call.1} parent=5 // pred_region
        // Predicated region
        $region53: #{tpu_custom_call.1} parent=51 // pred_check
          %p307 = pneg %p40
        $region54: #{tpu_custom_call.1} parent=51 // pred_check_branch
          %309 = sbr.rel (%p307) target = $region56
        $region55: #{tpu_custom_call.1} parent=51 // pred_region
          %p310 = scmp.lt.s32.totalorder %s20, 1
          %s311 = scalar_select %p310, %s20, 1
          %s312 = smul.addr %s311, 4
          %s313 = scalar_lea.vmem %s0, %s312
        $region56: #{tpu_custom_call.1} parent=51 // pred_fallthru
          _
      $region52: #{tpu_custom_call.1} parent=5 // pred_fallthru
        _
      %p314 = scmp.le.s32.totalorder 1, %s20
      %p315 = scmp.lt.s32.totalorder %s20, 3
      %p316 = pnand %p314, %p315
      %p317 = pneg %p316
      // Predicated region
      $region57: #{tpu_custom_call.1} parent=5 // pred_check
        _
      $region58: #{tpu_custom_call.1} parent=5 // pred_check_branch
        %319 = sbr.rel (%p316) target = $region60
      $region59: #{tpu_custom_call.1} parent=5 // pred_region
        %s320 = ssub.s32 %s20, 1
        %p321 = scmp.lt.s32.totalorder %s25, 1
        %s322 = scalar_select %p321, %s25, 1
        %s323 = smul.addr %s322, 4
        %s324 = scalar_lea.vmem %s0, %s323
        %p325 = pneg %p46
        %p326 = pneg %p43
        %p327 = pneg %p67
        %p328 = pneg %p64
        %p329 = pneg %p88
        %p330 = pneg %p85
        %p331 = pneg %p109
        %p332 = pneg %p106
        %p333 = pneg %p130
        %p334 = pneg %p127
        %p335 = pneg %p151
        %p336 = pneg %p148
        %p337 = pneg %p172
        %p338 = pneg %p169
        %p339 = pneg %p193
        %p340 = pneg %p190
        %p341 = pneg %p214
        %p342 = pneg %p211
        %p343 = pneg %p235
        %p344 = pneg %p232
        %p345 = pneg %p261
        %p346 = pneg %p258
        %s347 = sand.u32 %s248, 1
        %s348 = scalar_lea.sflag [#allocation4], %s347
        %s349 = sand.u32 %s248, 1
        %s350 = scalar_lea.vmem [#allocation3], %s349
        %p351 = scmp.lt.s32.totalorder %s25, 1
        %s352 = scalar_select %p351, %s25, 1
        %s353 = smul.addr %s352, 4
        %s354 = scalar_lea.vmem %s0, %s353
        %v355 = vld [vmem:[%s354] sm:$0xf]
        %v356 = vand.u32 2147483647, %v355
        %vm357 = vcmp.le.f32.partialorder %v356, 0.7853982
        %vm358 = vcmp.lt.s32.totalorder %v355, 0
        %v359 = vand.u32 %v355, 2139095040
        %v360 = vshrl.u32 %v359, 23
        %v361 = vsub.s32 %v360, 127
        %v362 = vand.u32 2147483647, %v355
        %v363 = vand.u32 %v362, 8388607
        %v364 = vor.u32 %v363, 8388608
        %v365 = vsub.s32 0, %v364
        %v366 = vadd.s32 %v361, 1
        %vm367 = vcmp.gt.s32.totalorder %v366, 0
        %v368 = vsel %vm367, %v366, 0
        %v369 = vshrl.u32 %v368, 5
        %v370 = vand.u32 %v368, 31
        %v371 = vsub.s32 32, %v370
        %v372 = vshrl.u32 683565275, %v371
        %v373 = vshll.u32 683565275, %v370
        %v374 = vshrl.u32 2475754826, %v371
        %v375 = vor.u32 %v373, %v374
        %v376 = vshll.u32 2475754826, %v370
        %v377 = vshrl.u32 2131351028, %v371
        %v378 = vor.u32 %v376, %v377
        %v379 = vshll.u32 2131351028, %v370
        %v380 = vshrl.u32 2102212464, %v371
        %v381 = vor.u32 %v379, %v380
        %v382 = vshll.u32 2102212464, %v370
        %v383 = vshrl.u32 920167782, %v371
        %v384 = vor.u32 %v382, %v383
        %v385 = vshll.u32 920167782, %v370
        %v386 = vshrl.u32 1326507024, %v371
        %v387 = vor.u32 %v385, %v386
        %vm388 = vcmp.lt.s32.totalorder %v369, 1
        %vm389 = vcmp.lt.s32.totalorder %v369, 2
        %vm390 = vcmp.lt.s32.totalorder %v369, 3
        %vm391 = vcmp.lt.s32.totalorder %v369, 4
        %v392 = vsel %vm388, %v372, %v375
        %v393 = vsel %vm391, %v381, 2102212464
        %v394 = vsel %vm390, %v378, %v393
        %v395 = vsel %vm389, %v392, %v394
        %v396 = vsel %vm388, %v375, %v378
        %v397 = vsel %vm391, %v384, 920167782
        %v398 = vsel %vm390, %v381, %v397
        %v399 = vsel %vm389, %v396, %v398
        %v400 = vsel %vm388, %v378, %v381
        %v401 = vsel %vm391, %v387, 1326507024
        %v402 = vsel %vm390, %v384, %v401
        %v403 = vsel %vm389, %v400, %v402
        %v404 = vshll.u32 %v364, 8
        %v405 = vmul.u32.u64.compose %v404, %v403
        %v406 = vextract.low.u32 %v405
        %v407 = vextract.high.u32 %v405
        %v408 = vmul.u32.u64.compose %v404, %v399
        %v409 = vextract.low.u32 %v408
        %v410 = vextract.high.u32 %v408
        %v411 = vmul.u32 %v404, %v395
        %v412 = vadd.s32 %v407, %v409
        %vm413 = vc.u32 %v407, %v409
        %v414 = vadd.s32 %v410, 1
        %v415 = vsel %vm413, %v414, %v410
        %v416 = vadd.s32 %v411, %v415
        %v417 = vadd.s32 %v416, 536870912
        %v418 = vshrl.u32 %v417, 30
        %v419 = vshll.u32 %v418, 30
        %v420 = vsub.s32 %v416, %v419
        %vm421 = vcmp.lt.s32.totalorder %v420, 0
        %v422 = vsub.s32 0, %v420
        %v423 = vsel %vm421, %v422, %v420
        %v424 = vclz %v423
        %v425 = vsub.s32 %v424, 2
        %vm426 = vcmp.gt.s32.totalorder 0, %v425
        %v427 = vsel %vm426, 0, %v425
        %v428 = vsub.s32 32, %v427
        %v429 = vshll.u32 %v420, %v427
        %v430 = vshrl.u32 %v412, %v428
        %v431 = vor.u32 %v429, %v430
        %v432 = vsub.s32 4294967266, %v427
        %v433 = vadd.s32 %v432, 127
        %v434 = vshll.u32 %v433, 23
        %v435 = vor.u32 4788187, %v434
        %v436 = vand.u32 2147483647, %v435
        %v438 = vcvt.s32.f32 %v431
        %v439 = vmul.f32 %v438, %v436
        %v440 = vxor.u32 %v439, 2147483648
        %v441 = vsel %vm358, %v440, %v439
        %v442 = vsub.s32 4, %v418
        %v443 = vsel %vm358, %v442, %v418
        %v444 = vsel %vm357, %v355, %v441
        %v445 = vsel %vm357, 0, %v443
        %v446 = vcosq.f32.pop %v444
        %v447 = vsinq.f32.pop %v444
        %vm448 = vweird.f32 %v355
        %v449 = vand.u32 %v445, 3
        %vm450 = vcmp.lt.s32.totalorder %v449, 2
        %vm451 = vcmp.eq.s32.totalorder %v449, 0
        %v452 = vxor.u32 %v447, 2147483648
        %v453 = vsel %vm451, %v446, %v452
        %vm454 = vcmp.eq.s32.totalorder %v449, 2
        %v455 = vxor.u32 %v446, 2147483648
        %v456 = vsel %vm454, %v455, %v447
        %v457 = vsel %vm450, %v453, %v456
        %v458 = vsel %vm448, nan, %v457
        %v459 = vand.u32 2147483647, %v355
        %vm460 = vcmp.le.f32.partialorder %v459, 0.7853982
        %vm461 = vcmp.lt.s32.totalorder %v355, 0
        %v462 = vand.u32 %v355, 2139095040
        %v463 = vshrl.u32 %v462, 23
        %v464 = vsub.s32 %v463, 127
        %v465 = vand.u32 2147483647, %v355
        %v466 = vand.u32 %v465, 8388607
        %v467 = vor.u32 %v466, 8388608
        %v468 = vsub.s32 0, %v467
        %v469 = vadd.s32 %v464, 1
        %vm470 = vcmp.gt.s32.totalorder %v469, 0
        %v471 = vsel %vm470, %v469, 0
        %v472 = vshrl.u32 %v471, 5
        %v473 = vand.u32 %v471, 31
        %v474 = vsub.s32 32, %v473
        %v475 = vshrl.u32 683565275, %v474
        %v476 = vshll.u32 683565275, %v473
        %v477 = vshrl.u32 2475754826, %v474
        %v478 = vor.u32 %v476, %v477
        %v479 = vshll.u32 2475754826, %v473
        %v480 = vshrl.u32 2131351028, %v474
        %v481 = vor.u32 %v479, %v480
        %v482 = vshll.u32 2131351028, %v473
        %v483 = vshrl.u32 2102212464, %v474
        %v484 = vor.u32 %v482, %v483
        %v485 = vshll.u32 2102212464, %v473
        %v486 = vshrl.u32 920167782, %v474
        %v487 = vor.u32 %v485, %v486
        %v488 = vshll.u32 920167782, %v473
        %v489 = vshrl.u32 1326507024, %v474
        %v490 = vor.u32 %v488, %v489
        %vm491 = vcmp.lt.s32.totalorder %v472, 1
        %vm492 = vcmp.lt.s32.totalorder %v472, 2
        %vm493 = vcmp.lt.s32.totalorder %v472, 3
        %vm494 = vcmp.lt.s32.totalorder %v472, 4
        %v495 = vsel %vm491, %v475, %v478
        %v496 = vsel %vm494, %v484, 2102212464
        %v497 = vsel %vm493, %v481, %v496
        %v498 = vsel %vm492, %v495, %v497
        %v499 = vsel %vm491, %v478, %v481
        %v500 = vsel %vm494, %v487, 920167782
        %v501 = vsel %vm493, %v484, %v500
        %v502 = vsel %vm492, %v499, %v501
        %v503 = vsel %vm491, %v481, %v484
        %v504 = vsel %vm494, %v490, 1326507024
        %v505 = vsel %vm493, %v487, %v504
        %v506 = vsel %vm492, %v503, %v505
        %v507 = vshll.u32 %v467, 8
        %v508 = vmul.u32.u64.compose %v507, %v506
        %v509 = vextract.low.u32 %v508
        %v510 = vextract.high.u32 %v508
        %v511 = vmul.u32.u64.compose %v507, %v502
        %v512 = vextract.low.u32 %v511
        %v513 = vextract.high.u32 %v511
        %v514 = vmul.u32 %v507, %v498
        %v515 = vadd.s32 %v510, %v512
        %vm516 = vc.u32 %v510, %v512
        %v517 = vadd.s32 %v513, 1
        %v518 = vsel %vm516, %v517, %v513
        %v519 = vadd.s32 %v514, %v518
        %v520 = vadd.s32 %v519, 536870912
        %v521 = vshrl.u32 %v520, 30
        %v522 = vshll.u32 %v521, 30
        %v523 = vsub.s32 %v519, %v522
        %vm524 = vcmp.lt.s32.totalorder %v523, 0
        %v525 = vsub.s32 0, %v523
        %v526 = vsel %vm524, %v525, %v523
        %v527 = vclz %v526
        %v528 = vsub.s32 %v527, 2
        %vm529 = vcmp.gt.s32.totalorder 0, %v528
        %v530 = vsel %vm529, 0, %v528
        %v531 = vsub.s32 32, %v530
        %v532 = vshll.u32 %v523, %v530
        %v533 = vshrl.u32 %v515, %v531
        %v534 = vor.u32 %v532, %v533
        %v535 = vsub.s32 4294967266, %v530
        %v536 = vadd.s32 %v535, 127
        %v537 = vshll.u32 %v536, 23
        %v538 = vor.u32 4788187, %v537
        %v539 = vand.u32 2147483647, %v538
        %v541 = vcvt.s32.f32 %v534
        %v542 = vmul.f32 %v541, %v539
        %v543 = vxor.u32 %v542, 2147483648
        %v544 = vsel %vm461, %v543, %v542
        %v545 = vsub.s32 4, %v521
        %v546 = vsel %vm461, %v545, %v521
        %v547 = vsel %vm460, %v355, %v544
        %v548 = vsel %vm460, 0, %v546
        %v549 = vcosq.f32.pop %v547
        %v550 = vsinq.f32.pop %v547
        %vm551 = vweird.f32 %v355
        %v552 = vadd.s32 %v548, 3
        %v553 = vand.u32 %v552, 3
        %vm554 = vcmp.lt.s32.totalorder %v553, 2
        %vm555 = vcmp.eq.s32.totalorder %v553, 0
        %v556 = vxor.u32 %v550, 2147483648
        %v557 = vsel %vm555, %v549, %v556
        %vm558 = vcmp.eq.s32.totalorder %v553, 2
        %v559 = vxor.u32 %v549, 2147483648
        %v560 = vsel %vm558, %v559, %v550
        %v561 = vsel %vm554, %v557, %v560
        %v562 = vsel %vm551, nan, %v561
        %v563 = vld [vmem:[%s1] sm:$0xff]
        %v564 = vld [vmem:[%s1 + $0x8] sm:$0xff]
        %v565 = vld [vmem:[%s1 + $0x10] sm:$0xff]
        %v566 = vld [vmem:[%s1 + $0x18] sm:$0xff]
        %v567 = vld [vmem:[%s2] sm:$0xff]
        %v568 = vld [vmem:[%s2 + $0x8] sm:$0xff]
        %v569 = vld [vmem:[%s2 + $0x10] sm:$0xff]
        %v570 = vld [vmem:[%s2 + $0x18] sm:$0xff]
        %vm571 = vcmask 31744
        %v573 = vsel %vm571, %v567, 0
        %v576 = vsel %vm571, %v568, 0
        %v579 = vsel %vm571, %v569, 0
        %v582 = vsel %vm571, %v570, 0
        %vm584 = vcmask 1043456
        %v586 = vsel %vm584, %v562, 0
        %588 = vmatprep.subr.mxu0 0.0
        %589 = vmatpush1.msra.mxu0 %v586
        %590 = vmatprep.subr.mxu0 0.0
        %591 = vmatpush1.msra.mxu0 0.0
        %592 = vmatprep.subr.mxu0 0.0
        %593 = vmatpush1.msra.mxu0 0.0
        %594 = vmatprep.subr.mxu0 0.0
        %595 = vmatpush1.msra.mxu0 0.0
        %596 = vmatprep.subr.mxu0 0.0
        %597 = vmatpush1.msra.mxu0 0.0
        %598 = vmatprep.subr.mxu0 0.0
        %599 = vmatpush1.msra.mxu0 0.0
        %600 = vmatprep.subr.mxu0 0.0
        %601 = vmatpush1.msra.mxu0 0.0
        %602 = vmatprep.subr.mxu0 0.0
        %603 = vmatpush1.msra.mxu0 0.0
        %604 = vmatprep.subr.mxu0 0.0
        %605 = vmatpush1.msra.mxu0 0.0
        %606 = vmatprep.subr.mxu0 0.0
        %607 = vmatpush1.msra.mxu0 0.0
        %608 = vmatprep.subr.mxu0 0.0
        %609 = vmatpush1.msra.mxu0 0.0
        %610 = vmatprep.subr.mxu0 0.0
        %611 = vmatpush1.msra.mxu0 0.0
        %612 = vmatprep.subr.mxu0 0.0
        %613 = vmatpush1.msra.mxu0 0.0
        %614 = vmatprep.subr.mxu0 0.0
        %615 = vmatpush1.msra.mxu0 0.0
        %616 = vmatprep.subr.mxu0 0.0
        %617 = vmatpush1.msra.mxu0 0.0
        %618 = vmatprep.subr.mxu0 0.0
        %619 = vmatpush1.msra.mxu0 0.0
        %620 = vmatprep.subr.mxu0 0.0
        %621 = vmatpush1.msra.mxu0 0.0
        %622 = vmatprep.subr.mxu0 0.0
        %623 = vmatpush1.msra.mxu0 0.0
        %624 = vmatprep.subr.mxu0 0.0
        %625 = vmatpush1.msra.mxu0 0.0
        %626 = vmatprep.subr.mxu0 0.0
        %627 = vmatpush1.msra.mxu0 0.0
        %628 = vmatprep.subr.mxu0 0.0
        %629 = vmatpush1.msra.mxu0 0.0
        %630 = vmatprep.subr.mxu0 0.0
        %631 = vmatpush1.msra.mxu0 0.0
        %632 = vmatprep.subr.mxu0 0.0
        %633 = vmatpush1.msra.mxu0 0.0
        %634 = vmatprep.subr.mxu0 0.0
        %635 = vmatpush1.msra.mxu0 0.0
        %636 = vmatprep.subr.mxu0 0.0
        %637 = vmatpush1.msra.mxu0 0.0
        %638 = vmatprep.subr.mxu0 0.0
        %639 = vmatpush1.msra.mxu0 0.0
        %640 = vmatprep.subr.mxu0 0.0
        %641 = vmatpush1.msra.mxu0 0.0
        %642 = vmatprep.subr.mxu0 0.0
        %643 = vmatpush1.msra.mxu0 0.0
        %644 = vmatprep.subr.mxu0 0.0
        %645 = vmatpush1.msra.mxu0 0.0
        %646 = vmatprep.subr.mxu0 0.0
        %647 = vmatpush1.msra.mxu0 0.0
        %648 = vmatprep.subr.mxu0 0.0
        %649 = vmatpush1.msra.mxu0 0.0
        %650 = vmatprep.subr.mxu0 0.0
        %651 = vmatpush1.msra.mxu0 0.0
        %652 = vmatprep.mubr.f32.mxu0 0.0
        %653 = vmatmul.mubr.f32.gmra.mrb[0].mxu0 %v573
        %v654 = vpop.f32.mrb[0].mxu0
        %v655 = vadd.f32 0.0, %v654
        %v656 = vpop.f32.mrb[0].mxu0
        %657 = vmatprep.mubr.f32.mxu0 0.0
        %658 = vmatmul.mubr.f32.gmra.mrb[0].mxu0 %v576
        %v659 = vpop.f32.mrb[0].mxu0
        %v660 = vadd.f32 0.0, %v659
        %v661 = vpop.f32.mrb[0].mxu0
        %662 = vmatprep.mubr.f32.mxu0 0.0
        %663 = vmatmul.mubr.f32.gmra.mrb[0].mxu0 %v579
        %v664 = vpop.f32.mrb[0].mxu0
        %v665 = vadd.f32 0.0, %v664
        %v666 = vpop.f32.mrb[0].mxu0
        %667 = vmatprep.mubr.f32.mxu0 0.0
        %668 = vmatmul.mubr.f32.gmra.mrb[0].mxu0 %v582
        %v669 = vpop.f32.mrb[0].mxu0
        %v670 = vadd.f32 0.0, %v669
        %v671 = vpop.f32.mrb[0].mxu0
        %672 = vdwg.mxu0
        %v674 = vsel %vm571, %v563, 0
        %v677 = vsel %vm571, %v564, 0
        %v680 = vsel %vm571, %v565, 0
        %v683 = vsel %vm571, %v566, 0
        %v686 = vsel %vm584, %v458, 0
        %688 = vmatprep.subr.mxu0 0.0
        %689 = vmatpush1.msra.mxu0 %v686
        %690 = vmatprep.subr.mxu0 0.0
        %691 = vmatpush1.msra.mxu0 0.0
        %692 = vmatprep.subr.mxu0 0.0
        %693 = vmatpush1.msra.mxu0 0.0
        %694 = vmatprep.subr.mxu0 0.0
        %695 = vmatpush1.msra.mxu0 0.0
        %696 = vmatprep.subr.mxu0 0.0
        %697 = vmatpush1.msra.mxu0 0.0
        %698 = vmatprep.subr.mxu0 0.0
        %699 = vmatpush1.msra.mxu0 0.0
        %700 = vmatprep.subr.mxu0 0.0
        %701 = vmatpush1.msra.mxu0 0.0
        %702 = vmatprep.subr.mxu0 0.0
        %703 = vmatpush1.msra.mxu0 0.0
        %704 = vmatprep.subr.mxu0 0.0
        %705 = vmatpush1.msra.mxu0 0.0
        %706 = vmatprep.subr.mxu0 0.0
        %707 = vmatpush1.msra.mxu0 0.0
        %708 = vmatprep.subr.mxu0 0.0
        %709 = vmatpush1.msra.mxu0 0.0
        %710 = vmatprep.subr.mxu0 0.0
        %711 = vmatpush1.msra.mxu0 0.0
        %712 = vmatprep.subr.mxu0 0.0
        %713 = vmatpush1.msra.mxu0 0.0
        %714 = vmatprep.subr.mxu0 0.0
        %715 = vmatpush1.msra.mxu0 0.0
        %716 = vmatprep.subr.mxu0 0.0
        %717 = vmatpush1.msra.mxu0 0.0
        %718 = vmatprep.subr.mxu0 0.0
        %719 = vmatpush1.msra.mxu0 0.0
        %720 = vmatprep.subr.mxu0 0.0
        %721 = vmatpush1.msra.mxu0 0.0
        %722 = vmatprep.subr.mxu0 0.0
        %723 = vmatpush1.msra.mxu0 0.0
        %724 = vmatprep.subr.mxu0 0.0
        %725 = vmatpush1.msra.mxu0 0.0
        %726 = vmatprep.subr.mxu0 0.0
        %727 = vmatpush1.msra.mxu0 0.0
        %728 = vmatprep.subr.mxu0 0.0
        %729 = vmatpush1.msra.mxu0 0.0
        %730 = vmatprep.subr.mxu0 0.0
        %731 = vmatpush1.msra.mxu0 0.0
        %732 = vmatprep.subr.mxu0 0.0
        %733 = vmatpush1.msra.mxu0 0.0
        %734 = vmatprep.subr.mxu0 0.0
        %735 = vmatpush1.msra.mxu0 0.0
        %736 = vmatprep.subr.mxu0 0.0
        %737 = vmatpush1.msra.mxu0 0.0
        %738 = vmatprep.subr.mxu0 0.0
        %739 = vmatpush1.msra.mxu0 0.0
        %740 = vmatprep.subr.mxu0 0.0
        %741 = vmatpush1.msra.mxu0 0.0
        %742 = vmatprep.subr.mxu0 0.0
        %743 = vmatpush1.msra.mxu0 0.0
        %744 = vmatprep.subr.mxu0 0.0
        %745 = vmatpush1.msra.mxu0 0.0
        %746 = vmatprep.subr.mxu0 0.0
        %747 = vmatpush1.msra.mxu0 0.0
        %748 = vmatprep.subr.mxu0 0.0
        %749 = vmatpush1.msra.mxu0 0.0
        %750 = vmatprep.subr.mxu0 0.0
        %751 = vmatpush1.msra.mxu0 0.0
        %752 = vmatprep.mubr.f32.mxu0 0.0
        %753 = vmatmul.mubr.f32.gmra.mrb[0].mxu0 %v674
        %v754 = vpop.f32.mrb[0].mxu0
        %v755 = vadd.f32 %v655, %v754
        %v756 = vpop.f32.mrb[0].mxu0
        %757 = vmatprep.mubr.f32.mxu0 0.0
        %758 = vmatmul.mubr.f32.gmra.mrb[0].mxu0 %v677
        %v759 = vpop.f32.mrb[0].mxu0
        %v760 = vadd.f32 %v660, %v759
        %v761 = vpop.f32.mrb[0].mxu0
        %762 = vmatprep.mubr.f32.mxu0 0.0
        %763 = vmatmul.mubr.f32.gmra.mrb[0].mxu0 %v680
        %v764 = vpop.f32.mrb[0].mxu0
        %v765 = vadd.f32 %v665, %v764
        %v766 = vpop.f32.mrb[0].mxu0
        %767 = vmatprep.mubr.f32.mxu0 0.0
        %768 = vmatmul.mubr.f32.gmra.mrb[0].mxu0 %v683
        %v769 = vpop.f32.mrb[0].mxu0
        %v770 = vadd.f32 %v670, %v769
        %v771 = vpop.f32.mrb[0].mxu0
        %772 = vdwg.mxu0
        %v773 = vld [vmem:[%s3] sm:$0xff]
        %v774 = vld [vmem:[%s3 + $0x8] sm:$0xff]
        %v775 = vld [vmem:[%s3 + $0x10] sm:$0xff]
        %v776 = vld [vmem:[%s3 + $0x18] sm:$0xff]
        %778 = vset.pattern.permute.xlu0 0
        %779 = vperm.xlu0 %778, %v773
        %v780 = vpop.permute.xlu0 %779
        %783 = vset.pattern.permute.xlu0 0
        %784 = vperm.xlu0 %783, %v774
        %v785 = vpop.permute.xlu0 %784
        %788 = vset.pattern.permute.xlu0 0
        %789 = vperm.xlu0 %788, %v775
        %v790 = vpop.permute.xlu0 %789
        %793 = vset.pattern.permute.xlu0 0
        %794 = vperm.xlu0 %793, %v776
        %v795 = vpop.permute.xlu0 %794
        %v797 = vadd.f32 %v755, %v780
        %v798 = vadd.f32 %v760, %v785
        %v799 = vadd.f32 %v765, %v790
        %v800 = vadd.f32 %v770, %v795
        %v801 = vtanh.pop %v797
        %v802 = vtanh.pop %v798
        %v803 = vtanh.pop %v799
        %v804 = vtanh.pop %v800
        %v805 = vld [vmem:[%s4] sm:$0xff]
        %v806 = vld [vmem:[%s4 + $0x8] sm:$0xff]
        %v807 = vld [vmem:[%s4 + $0x10] sm:$0xff]
        %v808 = vld [vmem:[%s4 + $0x18] sm:$0xff]
        %v809 = vld [vmem:[%s5] sm:$0xff]
        %v810 = vld [vmem:[%s5 + $0x8] sm:$0xff]
        %v811 = vld [vmem:[%s5 + $0x10] sm:$0xff]
        %v812 = vld [vmem:[%s5 + $0x18] sm:$0xff]
        %814 = vset.pattern.permute.xlu0 0
        %815 = vperm.xlu0 %814, %v809
        %v816 = vpop.permute.xlu0 %815
        %819 = vset.pattern.permute.xlu0 0
        %820 = vperm.xlu0 %819, %v810
        %v821 = vpop.permute.xlu0 %820
        %824 = vset.pattern.permute.xlu0 0
        %825 = vperm.xlu0 %824, %v811
        %v826 = vpop.permute.xlu0 %825
        %829 = vset.pattern.permute.xlu0 0
        %830 = vperm.xlu0 %829, %v812
        %v831 = vpop.permute.xlu0 %830
        %vm833 = vcmask 261120
        %v835 = vsel %vm833, %v805, 0
        %v838 = vsel %vm833, %v806, 0
        %v841 = vsel %vm833, %v807, 0
        %v844 = vsel %vm833, %v808, 0
        %846 = vmatprep.subr.mxu0 0.0
        %847 = vmatpush1.msra.mxu0 %v801
        %848 = vmatprep.subr.mxu0 0.0
        %849 = vmatpush1.msra.mxu0 %v802
        %850 = vmatprep.subr.mxu0 0.0
        %851 = vmatpush1.msra.mxu0 %v803
        %852 = vmatprep.subr.mxu0 0.0
        %853 = vmatpush1.msra.mxu0 %v804
        %854 = vmatprep.subr.mxu0 0.0
        %855 = vmatpush1.msra.mxu0 0.0
        %856 = vmatprep.subr.mxu0 0.0
        %857 = vmatpush1.msra.mxu0 0.0
        %858 = vmatprep.subr.mxu0 0.0
        %859 = vmatpush1.msra.mxu0 0.0
        %860 = vmatprep.subr.mxu0 0.0
        %861 = vmatpush1.msra.mxu0 0.0
        %862 = vmatprep.subr.mxu0 0.0
        %863 = vmatpush1.msra.mxu0 0.0
        %864 = vmatprep.subr.mxu0 0.0
        %865 = vmatpush1.msra.mxu0 0.0
        %866 = vmatprep.subr.mxu0 0.0
        %867 = vmatpush1.msra.mxu0 0.0
        %868 = vmatprep.subr.mxu0 0.0
        %869 = vmatpush1.msra.mxu0 0.0
        %870 = vmatprep.subr.mxu0 0.0
        %871 = vmatpush1.msra.mxu0 0.0
        %872 = vmatprep.subr.mxu0 0.0
        %873 = vmatpush1.msra.mxu0 0.0
        %874 = vmatprep.subr.mxu0 0.0
        %875 = vmatpush1.msra.mxu0 0.0
        %876 = vmatprep.subr.mxu0 0.0
        %877 = vmatpush1.msra.mxu0 0.0
        %878 = vmatprep.subr.mxu0 0.0
        %879 = vmatpush1.msra.mxu0 0.0
        %880 = vmatprep.subr.mxu0 0.0
        %881 = vmatpush1.msra.mxu0 0.0
        %882 = vmatprep.subr.mxu0 0.0
        %883 = vmatpush1.msra.mxu0 0.0
        %884 = vmatprep.subr.mxu0 0.0
        %885 = vmatpush1.msra.mxu0 0.0
        %886 = vmatprep.subr.mxu0 0.0
        %887 = vmatpush1.msra.mxu0 0.0
        %888 = vmatprep.subr.mxu0 0.0
        %889 = vmatpush1.msra.mxu0 0.0
        %890 = vmatprep.subr.mxu0 0.0
        %891 = vmatpush1.msra.mxu0 0.0
        %892 = vmatprep.subr.mxu0 0.0
        %893 = vmatpush1.msra.mxu0 0.0
        %894 = vmatprep.subr.mxu0 0.0
        %895 = vmatpush1.msra.mxu0 0.0
        %896 = vmatprep.subr.mxu0 0.0
        %897 = vmatpush1.msra.mxu0 0.0
        %898 = vmatprep.subr.mxu0 0.0
        %899 = vmatpush1.msra.mxu0 0.0
        %900 = vmatprep.subr.mxu0 0.0
        %901 = vmatpush1.msra.mxu0 0.0
        %902 = vmatprep.subr.mxu0 0.0
        %903 = vmatpush1.msra.mxu0 0.0
        %904 = vmatprep.subr.mxu0 0.0
        %905 = vmatpush1.msra.mxu0 0.0
        %906 = vmatprep.subr.mxu0 0.0
        %907 = vmatpush1.msra.mxu0 0.0
        %908 = vmatprep.subr.mxu0 0.0
        %909 = vmatpush1.msra.mxu0 0.0
        %910 = vmatprep.mubr.f32.mxu0 0.0
        %911 = vmatmul.mubr.f32.gmra.mrb[0].mxu0 %v835
        %v912 = vpop.f32.mrb[0].mxu0
        %v913 = vadd.f32 %v816, %v912
        %v914 = vpop.f32.mrb[0].mxu0
        %915 = vmatprep.mubr.f32.mxu0 0.0
        %916 = vmatmul.mubr.f32.gmra.mrb[0].mxu0 %v838
        %v917 = vpop.f32.mrb[0].mxu0
        %v918 = vadd.f32 %v821, %v917
        %v919 = vpop.f32.mrb[0].mxu0
        %920 = vmatprep.mubr.f32.mxu0 0.0
        %921 = vmatmul.mubr.f32.gmra.mrb[0].mxu0 %v841
        %v922 = vpop.f32.mrb[0].mxu0
        %v923 = vadd.f32 %v826, %v922
        %v924 = vpop.f32.mrb[0].mxu0
        %925 = vmatprep.mubr.f32.mxu0 0.0
        %926 = vmatmul.mubr.f32.gmra.mrb[0].mxu0 %v844
        %v927 = vpop.f32.mrb[0].mxu0
        %v928 = vadd.f32 %v831, %v927
        %v929 = vpop.f32.mrb[0].mxu0
        %930 = vdwg.mxu0
        %v931 = vtanh.pop %v913
        %v932 = vtanh.pop %v918
        %v933 = vtanh.pop %v923
        %v934 = vtanh.pop %v928
        %v935 = vadd.f32 %v931, %v801
        %v936 = vadd.f32 %v932, %v802
        %v937 = vadd.f32 %v933, %v803
        %v938 = vadd.f32 %v934, %v804
        %v939 = vld [vmem:[%s6] sm:$0xff]
        %v940 = vld [vmem:[%s6 + $0x8] sm:$0xff]
        %v941 = vld [vmem:[%s6 + $0x10] sm:$0xff]
        %v942 = vld [vmem:[%s6 + $0x18] sm:$0xff]
        %v943 = vld [vmem:[%s7] sm:$0xff]
        %v944 = vld [vmem:[%s7 + $0x8] sm:$0xff]
        %v945 = vld [vmem:[%s7 + $0x10] sm:$0xff]
        %v946 = vld [vmem:[%s7 + $0x18] sm:$0xff]
        %948 = vset.pattern.permute.xlu0 0
        %949 = vperm.xlu0 %948, %v943
        %v950 = vpop.permute.xlu0 %949
        %953 = vset.pattern.permute.xlu0 0
        %954 = vperm.xlu0 %953, %v944
        %v955 = vpop.permute.xlu0 %954
        %958 = vset.pattern.permute.xlu0 0
        %959 = vperm.xlu0 %958, %v945
        %v960 = vpop.permute.xlu0 %959
        %963 = vset.pattern.permute.xlu0 0
        %964 = vperm.xlu0 %963, %v946
        %v965 = vpop.permute.xlu0 %964
        %v968 = vsel %vm833, %v939, 0
        %v971 = vsel %vm833, %v940, 0
        %v974 = vsel %vm833, %v941, 0
        %v977 = vsel %vm833, %v942, 0
        %979 = vmatprep.subr.mxu0 0.0
        %980 = vmatpush1.msra.mxu0 %v935
        %981 = vmatprep.subr.mxu0 0.0
        %982 = vmatpush1.msra.mxu0 %v936
        %983 = vmatprep.subr.mxu0 0.0
        %984 = vmatpush1.msra.mxu0 %v937
        %985 = vmatprep.subr.mxu0 0.0
        %986 = vmatpush1.msra.mxu0 %v938
        %987 = vmatprep.subr.mxu0 0.0
        %988 = vmatpush1.msra.mxu0 0.0
        %989 = vmatprep.subr.mxu0 0.0
        %990 = vmatpush1.msra.mxu0 0.0
        %991 = vmatprep.subr.mxu0 0.0
        %992 = vmatpush1.msra.mxu0 0.0
        %993 = vmatprep.subr.mxu0 0.0
        %994 = vmatpush1.msra.mxu0 0.0
        %995 = vmatprep.subr.mxu0 0.0
        %996 = vmatpush1.msra.mxu0 0.0
        %997 = vmatprep.subr.mxu0 0.0
        %998 = vmatpush1.msra.mxu0 0.0
        %999 = vmatprep.subr.mxu0 0.0
        %1000 = vmatpush1.msra.mxu0 0.0
        %1001 = vmatprep.subr.mxu0 0.0
        %1002 = vmatpush1.msra.mxu0 0.0
        %1003 = vmatprep.subr.mxu0 0.0
        %1004 = vmatpush1.msra.mxu0 0.0
        %1005 = vmatprep.subr.mxu0 0.0
        %1006 = vmatpush1.msra.mxu0 0.0
        %1007 = vmatprep.subr.mxu0 0.0
        %1008 = vmatpush1.msra.mxu0 0.0
        %1009 = vmatprep.subr.mxu0 0.0
        %1010 = vmatpush1.msra.mxu0 0.0
        %1011 = vmatprep.subr.mxu0 0.0
        %1012 = vmatpush1.msra.mxu0 0.0
        %1013 = vmatprep.subr.mxu0 0.0
        %1014 = vmatpush1.msra.mxu0 0.0
        %1015 = vmatprep.subr.mxu0 0.0
        %1016 = vmatpush1.msra.mxu0 0.0
        %1017 = vmatprep.subr.mxu0 0.0
        %1018 = vmatpush1.msra.mxu0 0.0
        %1019 = vmatprep.subr.mxu0 0.0
        %1020 = vmatpush1.msra.mxu0 0.0
        %1021 = vmatprep.subr.mxu0 0.0
        %1022 = vmatpush1.msra.mxu0 0.0
        %1023 = vmatprep.subr.mxu0 0.0
        %1024 = vmatpush1.msra.mxu0 0.0
        %1025 = vmatprep.subr.mxu0 0.0
        %1026 = vmatpush1.msra.mxu0 0.0
        %1027 = vmatprep.subr.mxu0 0.0
        %1028 = vmatpush1.msra.mxu0 0.0
        %1029 = vmatprep.subr.mxu0 0.0
        %1030 = vmatpush1.msra.mxu0 0.0
        %1031 = vmatprep.subr.mxu0 0.0
        %1032 = vmatpush1.msra.mxu0 0.0
        %1033 = vmatprep.subr.mxu0 0.0
        %1034 = vmatpush1.msra.mxu0 0.0
        %1035 = vmatprep.subr.mxu0 0.0
        %1036 = vmatpush1.msra.mxu0 0.0
        %1037 = vmatprep.subr.mxu0 0.0
        %1038 = vmatpush1.msra.mxu0 0.0
        %1039 = vmatprep.subr.mxu0 0.0
        %1040 = vmatpush1.msra.mxu0 0.0
        %1041 = vmatprep.subr.mxu0 0.0
        %1042 = vmatpush1.msra.mxu0 0.0
        %1043 = vmatprep.mubr.f32.mxu0 0.0
        %1044 = vmatmul.mubr.f32.gmra.mrb[0].mxu0 %v968
        %v1045 = vpop.f32.mrb[0].mxu0
        %v1046 = vadd.f32 %v950, %v1045
        %v1047 = vpop.f32.mrb[0].mxu0
        %1048 = vmatprep.mubr.f32.mxu0 0.0
        %1049 = vmatmul.mubr.f32.gmra.mrb[0].mxu0 %v971
        %v1050 = vpop.f32.mrb[0].mxu0
        %v1051 = vadd.f32 %v955, %v1050
        %v1052 = vpop.f32.mrb[0].mxu0
        %1053 = vmatprep.mubr.f32.mxu0 0.0
        %1054 = vmatmul.mubr.f32.gmra.mrb[0].mxu0 %v974
        %v1055 = vpop.f32.mrb[0].mxu0
        %v1056 = vadd.f32 %v960, %v1055
        %v1057 = vpop.f32.mrb[0].mxu0
        %1058 = vmatprep.mubr.f32.mxu0 0.0
        %1059 = vmatmul.mubr.f32.gmra.mrb[0].mxu0 %v977
        %v1060 = vpop.f32.mrb[0].mxu0
        %v1061 = vadd.f32 %v965, %v1060
        %v1062 = vpop.f32.mrb[0].mxu0
        %1063 = vdwg.mxu0
        %v1064 = vtanh.pop %v1046
        %v1065 = vtanh.pop %v1051
        %v1066 = vtanh.pop %v1056
        %v1067 = vtanh.pop %v1061
        %v1068 = vadd.f32 %v1064, %v935
        %v1069 = vadd.f32 %v1065, %v936
        %v1070 = vadd.f32 %v1066, %v937
        %v1071 = vadd.f32 %v1067, %v938
        %v1072 = vld [vmem:[%s8] sm:$0x1]
        %s1073 = sld [smem:[#allocation2]]
        %v1074 = vstv %s1073
        %v1076 = vsel %vm833, %v1072, 0
        %1078 = vmatprep.subr.mxu0 0.0
        %1079 = vmatpush1.msra.mxu0 %v1068
        %1080 = vmatprep.subr.mxu0 0.0
        %1081 = vmatpush1.msra.mxu0 %v1069
        %1082 = vmatprep.subr.mxu0 0.0
        %1083 = vmatpush1.msra.mxu0 %v1070
        %1084 = vmatprep.subr.mxu0 0.0
        %1085 = vmatpush1.msra.mxu0 %v1071
        %1086 = vmatprep.subr.mxu0 0.0
        %1087 = vmatpush1.msra.mxu0 0.0
        %1088 = vmatprep.subr.mxu0 0.0
        %1089 = vmatpush1.msra.mxu0 0.0
        %1090 = vmatprep.subr.mxu0 0.0
        %1091 = vmatpush1.msra.mxu0 0.0
        %1092 = vmatprep.subr.mxu0 0.0
        %1093 = vmatpush1.msra.mxu0 0.0
        %1094 = vmatprep.subr.mxu0 0.0
        %1095 = vmatpush1.msra.mxu0 0.0
        %1096 = vmatprep.subr.mxu0 0.0
        %1097 = vmatpush1.msra.mxu0 0.0
        %1098 = vmatprep.subr.mxu0 0.0
        %1099 = vmatpush1.msra.mxu0 0.0
        %1100 = vmatprep.subr.mxu0 0.0
        %1101 = vmatpush1.msra.mxu0 0.0
        %1102 = vmatprep.subr.mxu0 0.0
        %1103 = vmatpush1.msra.mxu0 0.0
        %1104 = vmatprep.subr.mxu0 0.0
        %1105 = vmatpush1.msra.mxu0 0.0
        %1106 = vmatprep.subr.mxu0 0.0
        %1107 = vmatpush1.msra.mxu0 0.0
        %1108 = vmatprep.subr.mxu0 0.0
        %1109 = vmatpush1.msra.mxu0 0.0
        %1110 = vmatprep.subr.mxu0 0.0
        %1111 = vmatpush1.msra.mxu0 0.0
        %1112 = vmatprep.subr.mxu0 0.0
        %1113 = vmatpush1.msra.mxu0 0.0
        %1114 = vmatprep.subr.mxu0 0.0
        %1115 = vmatpush1.msra.mxu0 0.0
        %1116 = vmatprep.subr.mxu0 0.0
        %1117 = vmatpush1.msra.mxu0 0.0
        %1118 = vmatprep.subr.mxu0 0.0
        %1119 = vmatpush1.msra.mxu0 0.0
        %1120 = vmatprep.subr.mxu0 0.0
        %1121 = vmatpush1.msra.mxu0 0.0
        %1122 = vmatprep.subr.mxu0 0.0
        %1123 = vmatpush1.msra.mxu0 0.0
        %1124 = vmatprep.subr.mxu0 0.0
        %1125 = vmatpush1.msra.mxu0 0.0
        %1126 = vmatprep.subr.mxu0 0.0
        %1127 = vmatpush1.msra.mxu0 0.0
        %1128 = vmatprep.subr.mxu0 0.0
        %1129 = vmatpush1.msra.mxu0 0.0
        %1130 = vmatprep.subr.mxu0 0.0
        %1131 = vmatpush1.msra.mxu0 0.0
        %1132 = vmatprep.subr.mxu0 0.0
        %1133 = vmatpush1.msra.mxu0 0.0
        %1134 = vmatprep.subr.mxu0 0.0
        %1135 = vmatpush1.msra.mxu0 0.0
        %1136 = vmatprep.subr.mxu0 0.0
        %1137 = vmatpush1.msra.mxu0 0.0
        %1138 = vmatprep.subr.mxu0 0.0
        %1139 = vmatpush1.msra.mxu0 0.0
        %1140 = vmatprep.subr.mxu0 0.0
        %1141 = vmatpush1.msra.mxu0 0.0
        %1142 = vmatprep.mubr.f32.mxu0 0.0
        %1143 = vmatmul.mubr.f32.gmra.mrb[0].mxu0 %v1076
        %v1144 = vpop.f32.mrb[0].mxu0
        %v1145 = vadd.f32 %v1074, %v1144
        %v1146 = vpop.f32.mrb[0].mxu0
        %1147 = vdwg.mxu0
        %1148 = vst [vmem:[%s350] sm:$0x1] %v1145
        %s1149 = sand.u32 %s248, 1
        %s1150 = scalar_lea.sflag [#allocation4], %s1149
        %s1151 = sand.u32 %s248, 1
        %s1152 = scalar_lea.vmem [#allocation3], %s1151
        // Predicated region
        $region61: #{tpu_custom_call.1} parent=59 // pred_check
          %p1153 = pneg %p258
        $region62: #{tpu_custom_call.1} parent=59 // pred_check_branch
          %1155 = sbr.rel (%p1153) target = $region64
        $region63: #{tpu_custom_call.1} parent=59 // pred_region
          %s1157 = ssub.s32 16, 16
          %1158 = vsyncadd %s1150, %s1157
          %s1159 = smul.addr %s25, 16
          %s1160 = scalar_lea.hbm %s10, %s1159
          %s1162 = sshll.u32 %s1152, 4
          %s1163 = int_to_ptr.vmem [resolvable:$true] %s1162
          %1165 = dma.vmem_to_hbm [thread:$0]  %s1163, 16, %s1160, %s1150
        $region64: #{tpu_custom_call.1} parent=59 // pred_fallthru
          _
      $region60: #{tpu_custom_call.1} parent=5 // pred_fallthru
        _
      %p1166 = scmp.le.s32.totalorder 2, %s20
      // Predicated region
      $region65: #{tpu_custom_call.1} parent=5 // pred_check
        %p1167 = pneg %p1166
      $region66: #{tpu_custom_call.1} parent=5 // pred_check_branch
        %1169 = sbr.rel (%p1167) target = $region68
      $region67: #{tpu_custom_call.1} parent=5 // pred_region
        %s1170 = ssub.s32 %s20, 2
        // Predicated region
        $region69: #{tpu_custom_call.1} parent=67 // pred_check
          %p1171 = pneg %p264
        $region70: #{tpu_custom_call.1} parent=67 // pred_check_branch
          %1173 = sbr.rel (%p1171) target = $region72
        $region71: #{tpu_custom_call.1} parent=67 // pred_region
          %s1174 = sand.u32 %s249, 1
          %s1175 = scalar_lea.sflag [#allocation4], %s1174
          %s1176 = sand.u32 %s249, 1
          %s1177 = scalar_lea.vmem [#allocation3], %s1176
          %1178 = dma.done %s1175, 16
        $region72: #{tpu_custom_call.1} parent=67 // pred_fallthru
          _
      $region68: #{tpu_custom_call.1} parent=5 // pred_fallthru
        _
    $region6: #{tpu_custom_call.1} parent=1 // loop_footer
      %s24 = sadd.s32 1, %s20
    $region7: #{tpu_custom_call.1} parent=1 // loop_footer_branch
      %19 = sbr.rel target = $region3
    $region8: #{tpu_custom_call.1} parent=1 // loop_exit
      _
    %1179 = vsyncpa [#allocation4], 1
    %s1180 = scalar_lea.sflag [#allocation4], 1
    %1181 = vsyncpa %s1180, 1

</llo_original>
